<compile_context>
chip_gen: v7x
topology: tpu7x:2x2x1
jax: 0.10.0
libtpu: 0.0.40
codegen_flags: <defaults>
</compile_context>

<pallas_src>
import functools

import numpy as np
import jax
import jax.numpy as jnp
from jax import lax
from jax.experimental import pallas as pl
from jax.experimental.pallas import tpu as pltpu


def _round_up(x: int, m: int) -> int:
    return -(-x // m) * m


def _gst_kernel(x_ref, tok_ref, wq_ref, wk_ref, wv_ref, mask_ref, o_ref,
                *, num_heads, mxu_dtype):
    """One batch tile of the whole StyleTokenLayer forward.

    x_ref    : [TILE_N, Dq]   prosody encodings (streamed over the grid)
    tok_ref  : [T_blk,  Dk]   raw style tokens, zero-padded rows (tanh here)
    wq_ref   : [Dq, U]        W_query with 1/sqrt(key_dim) folded in
    wk_ref   : [Dk, U]        W_key
    wv_ref   : [Dk, U]        W_value
    mask_ref : [S_w, U]       block-diagonal head mask (real-token rows only)
    o_ref    : [TILE_N, U]    attended style embedding
    """
    f32 = jnp.float32
    x = x_ref[...].astype(f32)
    # Elementwise math in f32 (v5e has no bf16 VPU/EUP path).
    tok = jnp.tanh(tok_ref[...].astype(f32))

    # Projections on the MXU (attention scale already folded into wq).
    q = jnp.dot(x.astype(mxu_dtype), wq_ref[...].astype(mxu_dtype),
                preferred_element_type=f32)                        # [TILE_N, U]
    k = jnp.dot(tok.astype(mxu_dtype), wk_ref[...].astype(mxu_dtype),
                preferred_element_type=f32)                        # [T_blk, U]
    v = jnp.dot(tok.astype(mxu_dtype), wv_ref[...].astype(mxu_dtype),
                preferred_element_type=f32)                        # [T_blk, U]

    # Block-diagonal per-head operands: row c = (head, token) pair, columns are
    # units; the mask zeroes units of other heads and padded token rows.
    mask = mask_ref[...]
    kb = jnp.tile(k, (num_heads, 1)) * mask                        # [S_w, U]
    vb = jnp.tile(v, (num_heads, 1)) * mask                        # [S_w, U]

    # Scores for every (head, token) pair in one NT matmul (contract on units).
    s = lax.dot_general(q.astype(mxu_dtype), kb.astype(mxu_dtype),
                        dimension_numbers=(((1,), (1,)), ((), ())),
                        preferred_element_type=f32)                # [TILE_N, S_w]

    # Per-head softmax.  A shared per-row shift (max over all heads / padded
    # zero columns) is used; it cancels exactly in num/den.  Padded score
    # columns drop out because their mask rows are zero.
    m = jnp.max(s, axis=-1, keepdims=True)
    es = jnp.exp(s - m)

    num = jnp.dot(es.astype(mxu_dtype), vb.astype(mxu_dtype),
                  preferred_element_type=f32)                      # [TILE_N, U]
    den = jnp.dot(es.astype(mxu_dtype), mask.astype(mxu_dtype),
                  preferred_element_type=f32)                      # per-head denom
    out = num * pl.reciprocal(jnp.maximum(den, 1e-30), approx=True)
    o_ref[...] = out.astype(o_ref.dtype)


def style_token_layer(inputs, style_tokens, w_query, w_key, w_value, *,
                      num_heads, tile_n=512, mxu_dtype=jnp.float32):
    """JAX wrapper for StyleTokenLayer.forward.

    inputs       : [N, query_dim]
    style_tokens : [num_style_tokens, key_dim]
    w_query      : [query_dim, num_units]   (transpose of nn.Linear.weight)
    w_key/value  : [key_dim, num_units]
    mxu_dtype    : pass jnp.bfloat16 on v6e/v7x for peak MXU throughput
                   (accumulation stays f32); default f32 keeps bit-level parity.
    returns      : [N, 1, num_units]  (matches the PyTorch output shape)
    """
    n, dq = inputs.shape
    t, dk = style_tokens.shape
    u = w_query.shape[1]
    assert u % num_heads == 0, "num_units must be divisible by num_heads"
    split = u // num_heads
    key_dim = dk

    # Pad the token count to a sublane multiple so the in-kernel head tiling is
    # aligned; the score width is S_w = num_heads * T_blk columns.
    t_blk = _round_up(max(t, 1), 8)
    s_w = num_heads * t_blk

    # Batch tiling (sublane aligned).  Pad N up to a tile multiple only if needed.
    tile_n = max(8, min(_round_up(tile_n, 8), _round_up(n, 8)))
    n_p = _round_up(n, tile_n)
    grid_steps = n_p // tile_n

    f32 = jnp.float32
    x = inputs.astype(f32)
    if n_p != n:
        x = jnp.zeros((n_p, dq), f32).at[:n].set(x)

    tok_p = jnp.zeros((t_blk, dk), f32).at[:t].set(style_tokens.astype(f32))
    wq = w_query.astype(f32) * np.float32(1.0 / np.sqrt(key_dim))  # fold scale
    wk = w_key.astype(f32)
    wv = w_value.astype(f32)

    # Static block-diagonal head mask (host-side constant):
    # mask[c, j] = 1 iff score column c and unit column j belong to the same
    # head and c maps to a real (non-padded) style token.
    c_ids = np.arange(s_w)
    j_ids = np.arange(u)
    mask_np = (c_ids[:, None] // t_blk) == (j_ids[None, :] // split)
    mask_np &= (c_ids[:, None] % t_blk) < t
    mask = jnp.asarray(mask_np.astype(np.float32))                 # [S_w, U]

    kernel = functools.partial(_gst_kernel, num_heads=num_heads,
                               mxu_dtype=mxu_dtype)

    flops = int(2 * n_p * dq * u                       # query projection
                + grid_steps * 2 * t_blk * dk * 2 * u  # key/value projections
                + 2 * n_p * u * s_w                    # scores
                + 2 * n_p * s_w * u                    # numerator
                + 2 * n_p * s_w * u)                   # denominator
    transcendentals = int(n_p * s_w + grid_steps * t_blk * u + n_p * u)
    bytes_accessed = int(4 * (n_p * dq + n_p * u + t_blk * dk
                              + dq * u + 2 * dk * u + s_w * u))

    out_p = pl.pallas_call(
        kernel,
        out_shape=jax.ShapeDtypeStruct((n_p, u), inputs.dtype),
        grid=(grid_steps,),
        in_specs=[
            pl.BlockSpec((tile_n, dq), lambda i: (i, 0)),   # inputs: tiled over N
            pl.BlockSpec((t_blk, dk), lambda i: (0, 0)),    # style tokens: resident
            pl.BlockSpec((dq, u), lambda i: (0, 0)),        # W_query (scale folded)
            pl.BlockSpec((dk, u), lambda i: (0, 0)),        # W_key: resident
            pl.BlockSpec((dk, u), lambda i: (0, 0)),        # W_value: resident
            pl.BlockSpec((s_w, u), lambda i: (0, 0)),       # block-diag head mask
        ],
        out_specs=pl.BlockSpec((tile_n, u), lambda i: (i, 0)),
        compiler_params=pltpu.CompilerParams(
            dimension_semantics=("parallel",)),
        cost_estimate=pl.CostEstimate(flops=flops,
                                      transcendentals=transcendentals,
                                      bytes_accessed=bytes_accessed),
    )(x, tok_p, wq, wk, wv, mask)

    out = out_p if n_p == n else out_p[:n]
    # PyTorch returns [N, T_q=1, num_units].
    return out[:, None, :].astype(inputs.dtype)


def _reference(inputs, style_tokens, w_query, w_key, w_value, *, num_heads):
    """Plain-JAX reference reproducing the PyTorch module, for sanity check."""
    key_dim = style_tokens.shape[1]

    query = inputs[:, None, :]                                              # [N, 1, Dq]
    tokens = jnp.tanh(style_tokens)[None].repeat(inputs.shape[0], axis=0)   # [N, T, Dk]

    q = query @ w_query                                                     # [N, 1, U]
    k = tokens @ w_key                                                      # [N, T, U]
    v = tokens @ w_value                                                    # [N, T, U]

    def heads(x):  # [N, S, U] -> [H, N, S, split]
        return jnp.stack(jnp.split(x, num_heads, axis=2), axis=0)

    qh, kh, vh = heads(q), heads(k), heads(v)
    scores = qh @ jnp.swapaxes(kh, 2, 3) / (key_dim ** 0.5)                 # [H, N, 1, T]
    scores = jax.nn.softmax(scores, axis=3)
    out = scores @ vh                                                       # [H, N, 1, split]
    out = jnp.concatenate(jnp.split(out, num_heads, axis=0), axis=3)[0]     # [N, 1, U]
    return out


if __name__ == "__main__":
    # Module hyperparameters (consistent with the PyTorch __init__).
    num_heads = 4
    num_style_tokens = 10
    reference_encoder_embedding_dim = 32   # query_dim
    embedding_dim = 32                     # num_units
    key_dim = embedding_dim // num_heads   # 8
    batch = 2

    key = jax.random.PRNGKey(0)
    k_in, k_tok, k_q, k_k, k_v, k_big = jax.random.split(key, 6)

    inputs = jax.random.normal(k_in, (batch, reference_encoder_embedding_dim), jnp.float32)
    style_tokens = jax.random.normal(k_tok, (num_style_tokens, key_dim), jnp.float32)
    w_query = jax.random.normal(k_q, (reference_encoder_embedding_dim, embedding_dim),
                                jnp.float32) * 0.1
    w_key = jax.random.normal(k_k, (key_dim, embedding_dim), jnp.float32) * 0.1
    w_value = jax.random.normal(k_v, (key_dim, embedding_dim), jnp.float32) * 0.1

    # Small-batch check (module-sized shapes).
    out = style_token_layer(inputs, style_tokens, w_query, w_key, w_value,
                            num_heads=num_heads)
    out = jax.block_until_ready(out)
    ref = _reference(inputs, style_tokens, w_query, w_key, w_value, num_heads=num_heads)
    assert out.shape == (batch, 1, embedding_dim), out.shape
    assert jnp.allclose(out, ref, atol=1e-2, rtol=1e-2), "mismatch vs reference (small)"

    # Exercise the multi-step, megacore-parallel grid path (row padding + tiling).
    big_n = 300
    big_inputs = jax.random.normal(k_big, (big_n, reference_encoder_embedding_dim),
                                   jnp.float32)
    out_big = style_token_layer(big_inputs, style_tokens, w_query, w_key, w_value,
                                num_heads=num_heads, tile_n=128)
    out_big = jax.block_until_ready(out_big)
    ref_big = _reference(big_inputs, style_tokens, w_query, w_key, w_value,
                         num_heads=num_heads)
    assert out_big.shape == (big_n, 1, embedding_dim), out_big.shape
    assert jnp.allclose(out_big, ref_big, atol=1e-2, rtol=1e-2), "mismatch vs reference (tiled)"

    print("KERNEL_OK")
</pallas_src>

<mosaic_0001>
module attributes {stable_mosaic.version = 11 : i64} {
  func.func @_gst_kernel(%arg0: i32, %arg1: memref<8x32xf32, #tpu.memory_space<vmem>>, %arg2: memref<16x8xf32, #tpu.memory_space<vmem>>, %arg3: memref<32x32xf32, #tpu.memory_space<vmem>>, %arg4: memref<8x32xf32, #tpu.memory_space<vmem>>, %arg5: memref<8x32xf32, #tpu.memory_space<vmem>>, %arg6: memref<64x32xf32, #tpu.memory_space<vmem>>, %arg7: memref<8x32xf32, #tpu.memory_space<vmem>>) attributes {dimension_semantics = [#tpu.dimension_semantics<parallel>], iteration_bounds = array<i64: 1>, scalar_prefetch = 0 : i64, scratch_operands = 0 : i64, tpu.core_type = #tpu.core_type<tc>, window_params = [{transform_indices = @transform_0, window_bounds = array<i64: 8, 32>}, {pipeline_mode = #tpu.pipeline_mode<synchronous>, transform_indices = @transform_1, window_bounds = array<i64: 16, 8>}, {pipeline_mode = #tpu.pipeline_mode<synchronous>, transform_indices = @transform_2, window_bounds = array<i64: 32, 32>}, {pipeline_mode = #tpu.pipeline_mode<synchronous>, transform_indices = @transform_3, window_bounds = array<i64: 8, 32>}, {pipeline_mode = #tpu.pipeline_mode<synchronous>, transform_indices = @transform_4, window_bounds = array<i64: 8, 32>}, {pipeline_mode = #tpu.pipeline_mode<synchronous>, transform_indices = @transform_5, window_bounds = array<i64: 64, 32>}, {transform_indices = @transform_6, window_bounds = array<i64: 8, 32>}]} {
    %c0 = arith.constant 0 : index
    %c0_0 = arith.constant 0 : index
    %0 = vector.load %arg1[%c0, %c0_0] : memref<8x32xf32, #tpu.memory_space<vmem>>, vector<8x32xf32>
    %c0_1 = arith.constant 0 : index
    %c0_2 = arith.constant 0 : index
    %1 = vector.load %arg2[%c0_1, %c0_2] : memref<16x8xf32, #tpu.memory_space<vmem>>, vector<16x8xf32>
    %2 = math.tanh %1 : vector<16x8xf32>
    %c0_3 = arith.constant 0 : index
    %c0_4 = arith.constant 0 : index
    %3 = vector.load %arg3[%c0_3, %c0_4] : memref<32x32xf32, #tpu.memory_space<vmem>>, vector<32x32xf32>
    %cst = arith.constant dense<0.000000e+00> : vector<8x32xf32>
    %4 = tpu.matmul %0, %3, %cst {dimension_numbers = #tpu.dot_dimension_numbers<[1], [0], [0], [1], [0, 0, 1, 1], [], []>} : vector<8x32xf32>, vector<32x32xf32>, vector<8x32xf32> -> vector<8x32xf32>
    %c0_5 = arith.constant 0 : index
    %c0_6 = arith.constant 0 : index
    %5 = vector.load %arg4[%c0_5, %c0_6] : memref<8x32xf32, #tpu.memory_space<vmem>>, vector<8x32xf32>
    %cst_7 = arith.constant dense<0.000000e+00> : vector<16x32xf32>
    %6 = tpu.matmul %2, %5, %cst_7 {dimension_numbers = #tpu.dot_dimension_numbers<[1], [0], [0], [1], [0, 0, 1, 1], [], []>} : vector<16x8xf32>, vector<8x32xf32>, vector<16x32xf32> -> vector<16x32xf32>
    %c0_8 = arith.constant 0 : index
    %c0_9 = arith.constant 0 : index
    %7 = vector.load %arg5[%c0_8, %c0_9] : memref<8x32xf32, #tpu.memory_space<vmem>>, vector<8x32xf32>
    %cst_10 = arith.constant dense<0.000000e+00> : vector<16x32xf32>
    %8 = tpu.matmul %2, %7, %cst_10 {dimension_numbers = #tpu.dot_dimension_numbers<[1], [0], [0], [1], [0, 0, 1, 1], [], []>} : vector<16x8xf32>, vector<8x32xf32>, vector<16x32xf32> -> vector<16x32xf32>
    %c0_11 = arith.constant 0 : index
    %c0_12 = arith.constant 0 : index
    %9 = vector.load %arg6[%c0_11, %c0_12] : memref<64x32xf32, #tpu.memory_space<vmem>>, vector<64x32xf32>
    %10 = tpu.concatenate %6, %6, %6, %6 in 0 : vector<16x32xf32>, vector<16x32xf32>, vector<16x32xf32>, vector<16x32xf32> -> vector<64x32xf32>
    %11 = arith.mulf %10, %9 : vector<64x32xf32>
    %12 = tpu.concatenate %8, %8, %8, %8 in 0 : vector<16x32xf32>, vector<16x32xf32>, vector<16x32xf32>, vector<16x32xf32> -> vector<64x32xf32>
    %13 = arith.mulf %12, %9 : vector<64x32xf32>
    %cst_13 = arith.constant dense<0.000000e+00> : vector<8x64xf32>
    %14 = tpu.matmul %4, %11, %cst_13 {dimension_numbers = #tpu.dot_dimension_numbers<[1], [1], [0], [0], [0, 0, 1, 0], [], []>} : vector<8x32xf32>, vector<64x32xf32>, vector<8x64xf32> -> vector<8x64xf32>
    %cst_14 = arith.constant dense<0xFF800000> : vector<8xf32>
    %15 = vector.multi_reduction <maximumf>, %14, %cst_14 [1] : vector<8x64xf32> to vector<8xf32>
    %16 = vector.shape_cast %15 : vector<8xf32> to vector<8x1xf32>
    %17 = vector.broadcast %16 : vector<8x1xf32> to vector<8x64xf32>
    %18 = arith.subf %14, %17 : vector<8x64xf32>
    %19 = math.exp %18 : vector<8x64xf32>
    %cst_15 = arith.constant dense<0.000000e+00> : vector<8x32xf32>
    %20 = tpu.matmul %19, %13, %cst_15 {dimension_numbers = #tpu.dot_dimension_numbers<[1], [0], [0], [1], [0, 0, 1, 1], [], []>} : vector<8x64xf32>, vector<64x32xf32>, vector<8x32xf32> -> vector<8x32xf32>
    %cst_16 = arith.constant dense<0.000000e+00> : vector<8x32xf32>
    %21 = tpu.matmul %19, %9, %cst_16 {dimension_numbers = #tpu.dot_dimension_numbers<[1], [0], [0], [1], [0, 0, 1, 1], [], []>} : vector<8x64xf32>, vector<64x32xf32>, vector<8x32xf32> -> vector<8x32xf32>
    %cst_17 = arith.constant 1.000000e-30 : f32
    %22 = vector.broadcast %cst_17 : f32 to vector<8x32xf32>
    %23 = arith.maximumf %21, %22 : vector<8x32xf32>
    %24 = tpu.reciprocal %23 {approx = true} : vector<8x32xf32> -> vector<8x32xf32>
    %25 = arith.mulf %20, %24 : vector<8x32xf32>
    %c0_18 = arith.constant 0 : index
    %c0_19 = arith.constant 0 : index
    %26 = vector.load %arg7[%c0_18, %c0_19] : memref<8x32xf32, #tpu.memory_space<vmem>>, vector<8x32xf32>
    tpu.vector_store %arg7[%c0_18, %c0_19], %25 {strides = array<i32>} : memref<8x32xf32, #tpu.memory_space<vmem>>, vector<8x32xf32>,
    return
  }
  func.func @transform_0(%arg0: i32) -> (i32, i32) {
    %c0_i32 = arith.constant 0 : i32
    %c0_i32_0 = arith.constant 0 : i32
    return %arg0, %c0_i32 : i32, i32
  }
  func.func @transform_1(%arg0: i32) -> (i32, i32) {
    %c0_i32 = arith.constant 0 : i32
    %c0_i32_0 = arith.constant 0 : i32
    %c0_i32_1 = arith.constant 0 : i32
    return %c0_i32, %c0_i32_0 : i32, i32
  }
  func.func @transform_2(%arg0: i32) -> (i32, i32) {
    %c0_i32 = arith.constant 0 : i32
    %c0_i32_0 = arith.constant 0 : i32
    %c0_i32_1 = arith.constant 0 : i32
    return %c0_i32, %c0_i32_0 : i32, i32
  }
  func.func @transform_3(%arg0: i32) -> (i32, i32) {
    %c0_i32 = arith.constant 0 : i32
    %c0_i32_0 = arith.constant 0 : i32
    %c0_i32_1 = arith.constant 0 : i32
    return %c0_i32, %c0_i32_0 : i32, i32
  }
  func.func @transform_4(%arg0: i32) -> (i32, i32) {
    %c0_i32 = arith.constant 0 : i32
    %c0_i32_0 = arith.constant 0 : i32
    %c0_i32_1 = arith.constant 0 : i32
    return %c0_i32, %c0_i32_0 : i32, i32
  }
  func.func @transform_5(%arg0: i32) -> (i32, i32) {
    %c0_i32 = arith.constant 0 : i32
    %c0_i32_0 = arith.constant 0 : i32
    %c0_i32_1 = arith.constant 0 : i32
    return %c0_i32, %c0_i32_0 : i32, i32
  }
  func.func @transform_6(%arg0: i32) -> (i32, i32) {
    %c0_i32 = arith.constant 0 : i32
    %c0_i32_0 = arith.constant 0 : i32
    return %arg0, %c0_i32 : i32, i32
  }
}

</mosaic_0001>

<llo_original>
// kernel: tpu_custom_call.1
$region0: #{tpu_custom_call.1}
  #allocation0 [shape = 'u32[]', space=smem, size = 0x4, offset = 0x4, fixed_abs, tag = 'smem constant byte address 0x4 - core index']
  #allocation1 [shape = 'u32[144,128]{1,0:T(1,128)}', space=vmem, size = 0x12000, scoped, tag = 'internal scratch']
  %s0 = inlined_call_operand.vmem [shape: f32[8,32], index: 0, kind: input, shape index: {}]
  %s1 = inlined_call_operand.vmem [shape: f32[16,8], index: 1, kind: input, shape index: {}]
  %s2 = inlined_call_operand.vmem [shape: f32[32,32], index: 2, kind: input, shape index: {}]
  %s3 = inlined_call_operand.vmem [shape: f32[8,32], index: 3, kind: input, shape index: {}]
  %s4 = inlined_call_operand.vmem [shape: f32[8,32], index: 4, kind: input, shape index: {}]
  %s5 = inlined_call_operand.vmem [shape: f32[64,32], index: 5, kind: input, shape index: {}]
  %s6 = inlined_call_operand.hbm [shape: f32[8,32], index: 6, kind: output, shape index: {}]
  %s7 = sld [smem:[#allocation0]]
  $region34: #{tpu_custom_call.1} parent=0
    _
  %s9 = ssub.s32 1, %s7
  %s10 = scalar_select 0, %s9, %s7
  $region1: #{tpu_custom_call.1} parent=0
    #allocation2 [shape = 'u8[4096]{0}', space=vmem, size = 0x1000, scoped, tag = 'output window, operand 0, single buffered']
    #allocation3 [shape = 's32[1]{0}', space=sflag, size = 0x4, scoped, tag = 'scoped memory for tpu_custom_call.1']
    %11 = vsyncpa [#allocation3], 0
    // Predicated region
    $region2: #{tpu_custom_call.1} parent=1 // pred_check
      _
    $region3: #{tpu_custom_call.1} parent=1 // pred_check_branch
      %13 = sbr.rel (0) target = $region5
    $region4: #{tpu_custom_call.1} parent=1 // pred_region
      _
    $region5: #{tpu_custom_call.1} parent=1 // pred_fallthru
      _
    // Predicated region
    $region6: #{tpu_custom_call.1} parent=1 // pred_check
      _
    $region7: #{tpu_custom_call.1} parent=1 // pred_check_branch
      %15 = sbr.rel (0) target = $region9
    $region8: #{tpu_custom_call.1} parent=1 // pred_region
      _
    $region9: #{tpu_custom_call.1} parent=1 // pred_fallthru
      _
    // Predicated region
    $region10: #{tpu_custom_call.1} parent=1 // pred_check
      _
    $region11: #{tpu_custom_call.1} parent=1 // pred_check_branch
      %17 = sbr.rel (0) target = $region13
    $region12: #{tpu_custom_call.1} parent=1 // pred_region
      _
    $region13: #{tpu_custom_call.1} parent=1 // pred_fallthru
      _
    // Predicated region
    $region14: #{tpu_custom_call.1} parent=1 // pred_check
      _
    $region15: #{tpu_custom_call.1} parent=1 // pred_check_branch
      %19 = sbr.rel (0) target = $region17
    $region16: #{tpu_custom_call.1} parent=1 // pred_region
      _
    $region17: #{tpu_custom_call.1} parent=1 // pred_fallthru
      _
    // Predicated region
    $region18: #{tpu_custom_call.1} parent=1 // pred_check
      _
    $region19: #{tpu_custom_call.1} parent=1 // pred_check_branch
      %21 = sbr.rel (0) target = $region21
    $region20: #{tpu_custom_call.1} parent=1 // pred_region
      _
    $region21: #{tpu_custom_call.1} parent=1 // pred_fallthru
      _
    // Predicated region
    $region22: #{tpu_custom_call.1} parent=1 // pred_check
      _
    $region23: #{tpu_custom_call.1} parent=1 // pred_check_branch
      %23 = sbr.rel (0) target = $region25
    $region24: #{tpu_custom_call.1} parent=1 // pred_region
      _
    $region25: #{tpu_custom_call.1} parent=1 // pred_fallthru
      _
    %v24 = vld [vmem:[%s0] sm:$0xff]
    %v25 = vld [vmem:[%s1] sm:$0xff]
    %v26 = vld [vmem:[%s1 + $0x8] sm:$0xff]
    %v27 = vtanh.pop %v25
    %v28 = vtanh.pop %v26
    %v29 = vld [vmem:[%s2] sm:$0xff]
    %v30 = vld [vmem:[%s2 + $0x8] sm:$0xff]
    %v31 = vld [vmem:[%s2 + $0x10] sm:$0xff]
    %v32 = vld [vmem:[%s2 + $0x18] sm:$0xff]
    %vm33 = vcmask 261120
    %v35 = vsel %vm33, %v24, 0
    %37 = vmatprep.subr.mxu0 0.0
    %38 = vmatpush1.msra.mxu0 %v29
    %39 = vmatprep.subr.mxu0 0.0
    %40 = vmatpush1.msra.mxu0 %v30
    %41 = vmatprep.subr.mxu0 0.0
    %42 = vmatpush1.msra.mxu0 %v31
    %43 = vmatprep.subr.mxu0 0.0
    %44 = vmatpush1.msra.mxu0 %v32
    %45 = vmatprep.subr.mxu0 0.0
    %46 = vmatpush1.msra.mxu0 0.0
    %47 = vmatprep.subr.mxu0 0.0
    %48 = vmatpush1.msra.mxu0 0.0
    %49 = vmatprep.subr.mxu0 0.0
    %50 = vmatpush1.msra.mxu0 0.0
    %51 = vmatprep.subr.mxu0 0.0
    %52 = vmatpush1.msra.mxu0 0.0
    %53 = vmatprep.subr.mxu0 0.0
    %54 = vmatpush1.msra.mxu0 0.0
    %55 = vmatprep.subr.mxu0 0.0
    %56 = vmatpush1.msra.mxu0 0.0
    %57 = vmatprep.subr.mxu0 0.0
    %58 = vmatpush1.msra.mxu0 0.0
    %59 = vmatprep.subr.mxu0 0.0
    %60 = vmatpush1.msra.mxu0 0.0
    %61 = vmatprep.subr.mxu0 0.0
    %62 = vmatpush1.msra.mxu0 0.0
    %63 = vmatprep.subr.mxu0 0.0
    %64 = vmatpush1.msra.mxu0 0.0
    %65 = vmatprep.subr.mxu0 0.0
    %66 = vmatpush1.msra.mxu0 0.0
    %67 = vmatprep.subr.mxu0 0.0
    %68 = vmatpush1.msra.mxu0 0.0
    %69 = vmatprep.subr.mxu0 0.0
    %70 = vmatpush1.msra.mxu0 0.0
    %71 = vmatprep.subr.mxu0 0.0
    %72 = vmatpush1.msra.mxu0 0.0
    %73 = vmatprep.subr.mxu0 0.0
    %74 = vmatpush1.msra.mxu0 0.0
    %75 = vmatprep.subr.mxu0 0.0
    %76 = vmatpush1.msra.mxu0 0.0
    %77 = vmatprep.subr.mxu0 0.0
    %78 = vmatpush1.msra.mxu0 0.0
    %79 = vmatprep.subr.mxu0 0.0
    %80 = vmatpush1.msra.mxu0 0.0
    %81 = vmatprep.subr.mxu0 0.0
    %82 = vmatpush1.msra.mxu0 0.0
    %83 = vmatprep.subr.mxu0 0.0
    %84 = vmatpush1.msra.mxu0 0.0
    %85 = vmatprep.subr.mxu0 0.0
    %86 = vmatpush1.msra.mxu0 0.0
    %87 = vmatprep.subr.mxu0 0.0
    %88 = vmatpush1.msra.mxu0 0.0
    %89 = vmatprep.subr.mxu0 0.0
    %90 = vmatpush1.msra.mxu0 0.0
    %91 = vmatprep.subr.mxu0 0.0
    %92 = vmatpush1.msra.mxu0 0.0
    %93 = vmatprep.subr.mxu0 0.0
    %94 = vmatpush1.msra.mxu0 0.0
    %95 = vmatprep.subr.mxu0 0.0
    %96 = vmatpush1.msra.mxu0 0.0
    %97 = vmatprep.subr.mxu0 0.0
    %98 = vmatpush1.msra.mxu0 0.0
    %99 = vmatprep.subr.mxu0 0.0
    %100 = vmatpush1.msra.mxu0 0.0
    %101 = vmatprep.mubr.f32.mxu0 0.0
    %102 = vmatmul.mubr.f32.gmra.mrb[0].mxu0 %v35
    %v103 = vpop.f32.mrb[0].mxu0
    %v104 = vadd.f32 0.0, %v103
    %v105 = vpop.f32.mrb[0].mxu0
    %106 = vdwg.mxu0
    %v107 = vld [vmem:[%s3] sm:$0xff]
    %vm108 = vcmask 64512
    %v110 = vsel %vm108, %v27, 0
    %v113 = vsel %vm108, %v28, 0
    %115 = vmatprep.subr.mxu0 0.0
    %116 = vmatpush1.msra.mxu0 %v107
    %117 = vmatprep.subr.mxu0 0.0
    %118 = vmatpush1.msra.mxu0 0.0
    %119 = vmatprep.subr.mxu0 0.0
    %120 = vmatpush1.msra.mxu0 0.0
    %121 = vmatprep.subr.mxu0 0.0
    %122 = vmatpush1.msra.mxu0 0.0
    %123 = vmatprep.subr.mxu0 0.0
    %124 = vmatpush1.msra.mxu0 0.0
    %125 = vmatprep.subr.mxu0 0.0
    %126 = vmatpush1.msra.mxu0 0.0
    %127 = vmatprep.subr.mxu0 0.0
    %128 = vmatpush1.msra.mxu0 0.0
    %129 = vmatprep.subr.mxu0 0.0
    %130 = vmatpush1.msra.mxu0 0.0
    %131 = vmatprep.subr.mxu0 0.0
    %132 = vmatpush1.msra.mxu0 0.0
    %133 = vmatprep.subr.mxu0 0.0
    %134 = vmatpush1.msra.mxu0 0.0
    %135 = vmatprep.subr.mxu0 0.0
    %136 = vmatpush1.msra.mxu0 0.0
    %137 = vmatprep.subr.mxu0 0.0
    %138 = vmatpush1.msra.mxu0 0.0
    %139 = vmatprep.subr.mxu0 0.0
    %140 = vmatpush1.msra.mxu0 0.0
    %141 = vmatprep.subr.mxu0 0.0
    %142 = vmatpush1.msra.mxu0 0.0
    %143 = vmatprep.subr.mxu0 0.0
    %144 = vmatpush1.msra.mxu0 0.0
    %145 = vmatprep.subr.mxu0 0.0
    %146 = vmatpush1.msra.mxu0 0.0
    %147 = vmatprep.subr.mxu0 0.0
    %148 = vmatpush1.msra.mxu0 0.0
    %149 = vmatprep.subr.mxu0 0.0
    %150 = vmatpush1.msra.mxu0 0.0
    %151 = vmatprep.subr.mxu0 0.0
    %152 = vmatpush1.msra.mxu0 0.0
    %153 = vmatprep.subr.mxu0 0.0
    %154 = vmatpush1.msra.mxu0 0.0
    %155 = vmatprep.subr.mxu0 0.0
    %156 = vmatpush1.msra.mxu0 0.0
    %157 = vmatprep.subr.mxu0 0.0
    %158 = vmatpush1.msra.mxu0 0.0
    %159 = vmatprep.subr.mxu0 0.0
    %160 = vmatpush1.msra.mxu0 0.0
    %161 = vmatprep.subr.mxu0 0.0
    %162 = vmatpush1.msra.mxu0 0.0
    %163 = vmatprep.subr.mxu0 0.0
    %164 = vmatpush1.msra.mxu0 0.0
    %165 = vmatprep.subr.mxu0 0.0
    %166 = vmatpush1.msra.mxu0 0.0
    %167 = vmatprep.subr.mxu0 0.0
    %168 = vmatpush1.msra.mxu0 0.0
    %169 = vmatprep.subr.mxu0 0.0
    %170 = vmatpush1.msra.mxu0 0.0
    %171 = vmatprep.subr.mxu0 0.0
    %172 = vmatpush1.msra.mxu0 0.0
    %173 = vmatprep.subr.mxu0 0.0
    %174 = vmatpush1.msra.mxu0 0.0
    %175 = vmatprep.subr.mxu0 0.0
    %176 = vmatpush1.msra.mxu0 0.0
    %177 = vmatprep.subr.mxu0 0.0
    %178 = vmatpush1.msra.mxu0 0.0
    %179 = vmatprep.mubr.f32.mxu0 0.0
    %180 = vmatmul.mubr.f32.gmra.mrb[0].mxu0 %v110
    %v181 = vpop.f32.mrb[0].mxu0
    %v182 = vadd.f32 0.0, %v181
    %v183 = vpop.f32.mrb[0].mxu0
    %184 = vmatprep.mubr.f32.mxu0 0.0
    %185 = vmatmul.mubr.f32.gmra.mrb[0].mxu0 %v113
    %v186 = vpop.f32.mrb[0].mxu0
    %v187 = vadd.f32 0.0, %v186
    %v188 = vpop.f32.mrb[0].mxu0
    %189 = vdwg.mxu0
    %v190 = vld [vmem:[%s4] sm:$0xff]
    %191 = vmatprep.subr.mxu0 0.0
    %192 = vmatpush1.msra.mxu0 %v190
    %193 = vmatprep.subr.mxu0 0.0
    %194 = vmatpush1.msra.mxu0 0.0
    %195 = vmatprep.subr.mxu0 0.0
    %196 = vmatpush1.msra.mxu0 0.0
    %197 = vmatprep.subr.mxu0 0.0
    %198 = vmatpush1.msra.mxu0 0.0
    %199 = vmatprep.subr.mxu0 0.0
    %200 = vmatpush1.msra.mxu0 0.0
    %201 = vmatprep.subr.mxu0 0.0
    %202 = vmatpush1.msra.mxu0 0.0
    %203 = vmatprep.subr.mxu0 0.0
    %204 = vmatpush1.msra.mxu0 0.0
    %205 = vmatprep.subr.mxu0 0.0
    %206 = vmatpush1.msra.mxu0 0.0
    %207 = vmatprep.subr.mxu0 0.0
    %208 = vmatpush1.msra.mxu0 0.0
    %209 = vmatprep.subr.mxu0 0.0
    %210 = vmatpush1.msra.mxu0 0.0
    %211 = vmatprep.subr.mxu0 0.0
    %212 = vmatpush1.msra.mxu0 0.0
    %213 = vmatprep.subr.mxu0 0.0
    %214 = vmatpush1.msra.mxu0 0.0
    %215 = vmatprep.subr.mxu0 0.0
    %216 = vmatpush1.msra.mxu0 0.0
    %217 = vmatprep.subr.mxu0 0.0
    %218 = vmatpush1.msra.mxu0 0.0
    %219 = vmatprep.subr.mxu0 0.0
    %220 = vmatpush1.msra.mxu0 0.0
    %221 = vmatprep.subr.mxu0 0.0
    %222 = vmatpush1.msra.mxu0 0.0
    %223 = vmatprep.subr.mxu0 0.0
    %224 = vmatpush1.msra.mxu0 0.0
    %225 = vmatprep.subr.mxu0 0.0
    %226 = vmatpush1.msra.mxu0 0.0
    %227 = vmatprep.subr.mxu0 0.0
    %228 = vmatpush1.msra.mxu0 0.0
    %229 = vmatprep.subr.mxu0 0.0
    %230 = vmatpush1.msra.mxu0 0.0
    %231 = vmatprep.subr.mxu0 0.0
    %232 = vmatpush1.msra.mxu0 0.0
    %233 = vmatprep.subr.mxu0 0.0
    %234 = vmatpush1.msra.mxu0 0.0
    %235 = vmatprep.subr.mxu0 0.0
    %236 = vmatpush1.msra.mxu0 0.0
    %237 = vmatprep.subr.mxu0 0.0
    %238 = vmatpush1.msra.mxu0 0.0
    %239 = vmatprep.subr.mxu0 0.0
    %240 = vmatpush1.msra.mxu0 0.0
    %241 = vmatprep.subr.mxu0 0.0
    %242 = vmatpush1.msra.mxu0 0.0
    %243 = vmatprep.subr.mxu0 0.0
    %244 = vmatpush1.msra.mxu0 0.0
    %245 = vmatprep.subr.mxu0 0.0
    %246 = vmatpush1.msra.mxu0 0.0
    %247 = vmatprep.subr.mxu0 0.0
    %248 = vmatpush1.msra.mxu0 0.0
    %249 = vmatprep.subr.mxu0 0.0
    %250 = vmatpush1.msra.mxu0 0.0
    %251 = vmatprep.subr.mxu0 0.0
    %252 = vmatpush1.msra.mxu0 0.0
    %253 = vmatprep.subr.mxu0 0.0
    %254 = vmatpush1.msra.mxu0 0.0
    %255 = vmatprep.mubr.f32.mxu0 0.0
    %256 = vmatmul.mubr.f32.gmra.mrb[0].mxu0 %v110
    %v257 = vpop.f32.mrb[0].mxu0
    %v258 = vadd.f32 0.0, %v257
    %v259 = vpop.f32.mrb[0].mxu0
    %260 = vmatprep.mubr.f32.mxu0 0.0
    %261 = vmatmul.mubr.f32.gmra.mrb[0].mxu0 %v113
    %v262 = vpop.f32.mrb[0].mxu0
    %v263 = vadd.f32 0.0, %v262
    %v264 = vpop.f32.mrb[0].mxu0
    %265 = vdwg.mxu0
    %v266 = vld [vmem:[%s5] sm:$0xff]
    %v267 = vld [vmem:[%s5 + $0x8] sm:$0xff]
    %v268 = vld [vmem:[%s5 + $0x10] sm:$0xff]
    %v269 = vld [vmem:[%s5 + $0x18] sm:$0xff]
    %v270 = vld [vmem:[%s5 + $0x20] sm:$0xff]
    %v271 = vld [vmem:[%s5 + $0x28] sm:$0xff]
    %v272 = vld [vmem:[%s5 + $0x30] sm:$0xff]
    %v273 = vld [vmem:[%s5 + $0x38] sm:$0xff]
    %v274 = vmul.f32 %v182, %v266
    %v275 = vmul.f32 %v187, %v267
    %v276 = vmul.f32 %v182, %v268
    %v277 = vmul.f32 %v187, %v269
    %v278 = vmul.f32 %v182, %v270
    %v279 = vmul.f32 %v187, %v271
    %v280 = vmul.f32 %v182, %v272
    %v281 = vmul.f32 %v187, %v273
    %v282 = vmul.f32 %v258, %v266
    %v283 = vmul.f32 %v263, %v267
    %v284 = vmul.f32 %v258, %v268
    %v285 = vmul.f32 %v263, %v269
    %v286 = vmul.f32 %v258, %v270
    %v287 = vmul.f32 %v263, %v271
    %v288 = vmul.f32 %v258, %v272
    %v289 = vmul.f32 %v263, %v273
    %v291 = vsel %vm33, %v104, 0
    %v294 = vsel %vm33, %v274, 0
    %v297 = vsel %vm33, %v275, 0
    %v300 = vsel %vm33, %v276, 0
    %v303 = vsel %vm33, %v277, 0
    %v306 = vsel %vm33, %v278, 0
    %v309 = vsel %vm33, %v279, 0
    %v312 = vsel %vm33, %v280, 0
    %v315 = vsel %vm33, %v281, 0
    %317 = vmatprep.subr.mxu0 0.0
    %318 = vmatpush1.xpose.msra.mxu0 %v294
    %319 = vmatprep.subr.mxu0 0.0
    %320 = vmatpush1.xpose.msra.mxu0 %v297
    %321 = vmatprep.subr.mxu0 0.0
    %322 = vmatpush1.xpose.msra.mxu0 %v300
    %323 = vmatprep.subr.mxu0 0.0
    %324 = vmatpush1.xpose.msra.mxu0 %v303
    %325 = vmatprep.subr.mxu0 0.0
    %326 = vmatpush1.xpose.msra.mxu0 %v306
    %327 = vmatprep.subr.mxu0 0.0
    %328 = vmatpush1.xpose.msra.mxu0 %v309
    %329 = vmatprep.subr.mxu0 0.0
    %330 = vmatpush1.xpose.msra.mxu0 %v312
    %331 = vmatprep.subr.mxu0 0.0
    %332 = vmatpush1.xpose.msra.mxu0 %v315
    %333 = vmatprep.subr.mxu0 0.0
    %334 = vmatpush1.xpose.msra.mxu0 0.0
    %335 = vmatprep.subr.mxu0 0.0
    %336 = vmatpush1.xpose.msra.mxu0 0.0
    %337 = vmatprep.subr.mxu0 0.0
    %338 = vmatpush1.xpose.msra.mxu0 0.0
    %339 = vmatprep.subr.mxu0 0.0
    %340 = vmatpush1.xpose.msra.mxu0 0.0
    %341 = vmatprep.subr.mxu0 0.0
    %342 = vmatpush1.xpose.msra.mxu0 0.0
    %343 = vmatprep.subr.mxu0 0.0
    %344 = vmatpush1.xpose.msra.mxu0 0.0
    %345 = vmatprep.subr.mxu0 0.0
    %346 = vmatpush1.xpose.msra.mxu0 0.0
    %347 = vmatprep.subr.mxu0 0.0
    %348 = vmatpush1.xpose.msra.mxu0 0.0
    %349 = vmatprep.subr.mxu0 0.0
    %350 = vmatpush1.xpose.msra.mxu0 0.0
    %351 = vmatprep.subr.mxu0 0.0
    %352 = vmatpush1.xpose.msra.mxu0 0.0
    %353 = vmatprep.subr.mxu0 0.0
    %354 = vmatpush1.xpose.msra.mxu0 0.0
    %355 = vmatprep.subr.mxu0 0.0
    %356 = vmatpush1.xpose.msra.mxu0 0.0
    %357 = vmatprep.subr.mxu0 0.0
    %358 = vmatpush1.xpose.msra.mxu0 0.0
    %359 = vmatprep.subr.mxu0 0.0
    %360 = vmatpush1.xpose.msra.mxu0 0.0
    %361 = vmatprep.subr.mxu0 0.0
    %362 = vmatpush1.xpose.msra.mxu0 0.0
    %363 = vmatprep.subr.mxu0 0.0
    %364 = vmatpush1.xpose.msra.mxu0 0.0
    %365 = vmatprep.subr.mxu0 0.0
    %366 = vmatpush1.xpose.msra.mxu0 0.0
    %367 = vmatprep.subr.mxu0 0.0
    %368 = vmatpush1.xpose.msra.mxu0 0.0
    %369 = vmatprep.subr.mxu0 0.0
    %370 = vmatpush1.xpose.msra.mxu0 0.0
    %371 = vmatprep.subr.mxu0 0.0
    %372 = vmatpush1.xpose.msra.mxu0 0.0
    %373 = vmatprep.subr.mxu0 0.0
    %374 = vmatpush1.xpose.msra.mxu0 0.0
    %375 = vmatprep.subr.mxu0 0.0
    %376 = vmatpush1.xpose.msra.mxu0 0.0
    %377 = vmatprep.subr.mxu0 0.0
    %378 = vmatpush1.xpose.msra.mxu0 0.0
    %379 = vmatprep.subr.mxu0 0.0
    %380 = vmatpush1.xpose.msra.mxu0 0.0
    %381 = vmatprep.mubr.f32.mxu0 0.0
    %382 = vmatmul.mubr.f32.gmra.mrb[0].mxu0 %v291
    %v383 = vpop.f32.mrb[0].mxu0
    %v384 = vadd.f32 0.0, %v383
    %v385 = vpop.f32.mrb[0].mxu0
    %386 = vdwg.mxu0
    %vm387 = vcmask 523264
    %v388 = vsel %vm387, %v384, -inf
    %389 = vmax.xlane.f32.xlu0 %v388
    %v390 = vpop.xlane.xlu0 %389
    %v391 = vsub.f32 %v384, %v390
    %v392 = vmul.f32 %v391, 1.442695
    %v393 = vpow.pop %v392
    %v395 = vsel %vm387, %v393, 0
    %397 = vmatprep.subr.mxu0 0.0
    %398 = vmatpush1.msra.mxu0 %v282
    %399 = vmatprep.subr.mxu0 0.0
    %400 = vmatpush1.msra.mxu0 %v283
    %401 = vmatprep.subr.mxu0 0.0
    %402 = vmatpush1.msra.mxu0 %v284
    %403 = vmatprep.subr.mxu0 0.0
    %404 = vmatpush1.msra.mxu0 %v285
    %405 = vmatprep.subr.mxu0 0.0
    %406 = vmatpush1.msra.mxu0 %v286
    %407 = vmatprep.subr.mxu0 0.0
    %408 = vmatpush1.msra.mxu0 %v287
    %409 = vmatprep.subr.mxu0 0.0
    %410 = vmatpush1.msra.mxu0 %v288
    %411 = vmatprep.subr.mxu0 0.0
    %412 = vmatpush1.msra.mxu0 %v289
    %413 = vmatprep.subr.mxu0 0.0
    %414 = vmatpush1.msra.mxu0 0.0
    %415 = vmatprep.subr.mxu0 0.0
    %416 = vmatpush1.msra.mxu0 0.0
    %417 = vmatprep.subr.mxu0 0.0
    %418 = vmatpush1.msra.mxu0 0.0
    %419 = vmatprep.subr.mxu0 0.0
    %420 = vmatpush1.msra.mxu0 0.0
    %421 = vmatprep.subr.mxu0 0.0
    %422 = vmatpush1.msra.mxu0 0.0
    %423 = vmatprep.subr.mxu0 0.0
    %424 = vmatpush1.msra.mxu0 0.0
    %425 = vmatprep.subr.mxu0 0.0
    %426 = vmatpush1.msra.mxu0 0.0
    %427 = vmatprep.subr.mxu0 0.0
    %428 = vmatpush1.msra.mxu0 0.0
    %429 = vmatprep.subr.mxu0 0.0
    %430 = vmatpush1.msra.mxu0 0.0
    %431 = vmatprep.subr.mxu0 0.0
    %432 = vmatpush1.msra.mxu0 0.0
    %433 = vmatprep.subr.mxu0 0.0
    %434 = vmatpush1.msra.mxu0 0.0
    %435 = vmatprep.subr.mxu0 0.0
    %436 = vmatpush1.msra.mxu0 0.0
    %437 = vmatprep.subr.mxu0 0.0
    %438 = vmatpush1.msra.mxu0 0.0
    %439 = vmatprep.subr.mxu0 0.0
    %440 = vmatpush1.msra.mxu0 0.0
    %441 = vmatprep.subr.mxu0 0.0
    %442 = vmatpush1.msra.mxu0 0.0
    %443 = vmatprep.subr.mxu0 0.0
    %444 = vmatpush1.msra.mxu0 0.0
    %445 = vmatprep.subr.mxu0 0.0
    %446 = vmatpush1.msra.mxu0 0.0
    %447 = vmatprep.subr.mxu0 0.0
    %448 = vmatpush1.msra.mxu0 0.0
    %449 = vmatprep.subr.mxu0 0.0
    %450 = vmatpush1.msra.mxu0 0.0
    %451 = vmatprep.subr.mxu0 0.0
    %452 = vmatpush1.msra.mxu0 0.0
    %453 = vmatprep.subr.mxu0 0.0
    %454 = vmatpush1.msra.mxu0 0.0
    %455 = vmatprep.subr.mxu0 0.0
    %456 = vmatpush1.msra.mxu0 0.0
    %457 = vmatprep.subr.mxu0 0.0
    %458 = vmatpush1.msra.mxu0 0.0
    %459 = vmatprep.subr.mxu0 0.0
    %460 = vmatpush1.msra.mxu0 0.0
    %461 = vmatprep.mubr.f32.mxu0 0.0
    %462 = vmatmul.mubr.f32.gmra.mrb[0].mxu0 %v395
    %v463 = vpop.f32.mrb[0].mxu0
    %v464 = vadd.f32 0.0, %v463
    %v465 = vpop.f32.mrb[0].mxu0
    %466 = vdwg.mxu0
    %467 = vmatprep.subr.mxu0 0.0
    %468 = vmatpush1.msra.mxu0 %v266
    %469 = vmatprep.subr.mxu0 0.0
    %470 = vmatpush1.msra.mxu0 %v267
    %471 = vmatprep.subr.mxu0 0.0
    %472 = vmatpush1.msra.mxu0 %v268
    %473 = vmatprep.subr.mxu0 0.0
    %474 = vmatpush1.msra.mxu0 %v269
    %475 = vmatprep.subr.mxu0 0.0
    %476 = vmatpush1.msra.mxu0 %v270
    %477 = vmatprep.subr.mxu0 0.0
    %478 = vmatpush1.msra.mxu0 %v271
    %479 = vmatprep.subr.mxu0 0.0
    %480 = vmatpush1.msra.mxu0 %v272
    %481 = vmatprep.subr.mxu0 0.0
    %482 = vmatpush1.msra.mxu0 %v273
    %483 = vmatprep.subr.mxu0 0.0
    %484 = vmatpush1.msra.mxu0 0.0
    %485 = vmatprep.subr.mxu0 0.0
    %486 = vmatpush1.msra.mxu0 0.0
    %487 = vmatprep.subr.mxu0 0.0
    %488 = vmatpush1.msra.mxu0 0.0
    %489 = vmatprep.subr.mxu0 0.0
    %490 = vmatpush1.msra.mxu0 0.0
    %491 = vmatprep.subr.mxu0 0.0
    %492 = vmatpush1.msra.mxu0 0.0
    %493 = vmatprep.subr.mxu0 0.0
    %494 = vmatpush1.msra.mxu0 0.0
    %495 = vmatprep.subr.mxu0 0.0
    %496 = vmatpush1.msra.mxu0 0.0
    %497 = vmatprep.subr.mxu0 0.0
    %498 = vmatpush1.msra.mxu0 0.0
    %499 = vmatprep.subr.mxu0 0.0
    %500 = vmatpush1.msra.mxu0 0.0
    %501 = vmatprep.subr.mxu0 0.0
    %502 = vmatpush1.msra.mxu0 0.0
    %503 = vmatprep.subr.mxu0 0.0
    %504 = vmatpush1.msra.mxu0 0.0
    %505 = vmatprep.subr.mxu0 0.0
    %506 = vmatpush1.msra.mxu0 0.0
    %507 = vmatprep.subr.mxu0 0.0
    %508 = vmatpush1.msra.mxu0 0.0
    %509 = vmatprep.subr.mxu0 0.0
    %510 = vmatpush1.msra.mxu0 0.0
    %511 = vmatprep.subr.mxu0 0.0
    %512 = vmatpush1.msra.mxu0 0.0
    %513 = vmatprep.subr.mxu0 0.0
    %514 = vmatpush1.msra.mxu0 0.0
    %515 = vmatprep.subr.mxu0 0.0
    %516 = vmatpush1.msra.mxu0 0.0
    %517 = vmatprep.subr.mxu0 0.0
    %518 = vmatpush1.msra.mxu0 0.0
    %519 = vmatprep.subr.mxu0 0.0
    %520 = vmatpush1.msra.mxu0 0.0
    %521 = vmatprep.subr.mxu0 0.0
    %522 = vmatpush1.msra.mxu0 0.0
    %523 = vmatprep.subr.mxu0 0.0
    %524 = vmatpush1.msra.mxu0 0.0
    %525 = vmatprep.subr.mxu0 0.0
    %526 = vmatpush1.msra.mxu0 0.0
    %527 = vmatprep.subr.mxu0 0.0
    %528 = vmatpush1.msra.mxu0 0.0
    %529 = vmatprep.subr.mxu0 0.0
    %530 = vmatpush1.msra.mxu0 0.0
    %531 = vmatprep.mubr.f32.mxu0 0.0
    %532 = vmatmul.mubr.f32.gmra.mrb[0].mxu0 %v395
    %v533 = vpop.f32.mrb[0].mxu0
    %v534 = vadd.f32 0.0, %v533
    %v535 = vpop.f32.mrb[0].mxu0
    %536 = vdwg.mxu0
    %v537 = vmax.f32 %v534, 1e-30
    %v538 = vrcp.pop %v537
    %v539 = vmul.f32 %v464, %v538
    %540 = vst.msk [vmem:[#allocation2] sm:$0xff] %vm33, %v539
    // Predicated region
    $region26: #{tpu_custom_call.1} parent=1 // pred_check
      _
    $region27: #{tpu_custom_call.1} parent=1 // pred_check_branch
      %542 = sbr.rel (0) target = $region29
    $region28: #{tpu_custom_call.1} parent=1 // pred_region
      %s544 = ssub.s32 128, 128
      %545 = vsyncadd [#allocation3], %s544
      %s547 = sshll.u32 [#allocation2], 4
      %s548 = int_to_ptr.vmem [resolvable:$true] %s547
      %550 = dma.vmem_to_hbm [thread:$0]  %s548, 128, %s6, [#allocation3]
    $region29: #{tpu_custom_call.1} parent=1 // pred_fallthru
      _
    // Predicated region
    $region30: #{tpu_custom_call.1} parent=1 // pred_check
      _
    $region31: #{tpu_custom_call.1} parent=1 // pred_check_branch
      %552 = sbr.rel (0) target = $region33
    $region32: #{tpu_custom_call.1} parent=1 // pred_region
      %553 = dma.done [#allocation3], 128
    $region33: #{tpu_custom_call.1} parent=1 // pred_fallthru
      _
    %554 = vsyncpa [#allocation3], 1

</llo_original>
